<compile_context>
chip_gen: v7x
topology: tpu7x:2x2x1
jax: 0.10.0
libtpu: 0.0.40
codegen_flags: <defaults>
</compile_context>

<pallas_src>
import jax
import jax.numpy as jnp
from jax.experimental import pallas as pl
from jax.experimental.pallas import tpu as pltpu


def _h_swish_kernel(x_ref, o_ref):
    # h_swish(x) = x * relu6(x + 3) / 6  -- pure VPU work, no transcendentals.
    x = x_ref[...].astype(jnp.float32)
    y = x * jnp.clip(x + 3.0, 0.0, 6.0) * (1.0 / 6.0)
    o_ref[...] = y.astype(o_ref.dtype)


def _sublane_multiple(dtype):
    # Native TPU tiling: (8,128) for 4-byte dtypes, (16,128) bf16, (32,128) int8.
    itemsize = jnp.dtype(dtype).itemsize
    return 8 * max(1, 4 // itemsize)


def _h_swish_2d(x2d):
    """Apply h_swish to a (rows, C) slab.

    C must be a multiple of 128, or the slab must be small enough to fit in a
    single full-extent block (block_shape == array shape is always legal).
    """
    rows, C = x2d.shape
    itemsize = jnp.dtype(x2d.dtype).itemsize
    sub = _sublane_multiple(x2d.dtype)

    # Row tile: ~4 MiB per block amortizes the ~0.35 us per-grid-step overhead
    # while keeping 2x(in+out) double buffers well under the VMEM limit.
    target_bytes = 4 * 1024 * 1024
    tr = max(sub, (target_bytes // max(1, C * itemsize)) // sub * sub)
    if tr >= rows:
        if rows > 2 * sub:
            # Keep >= 2 blocks so the "parallel" axis can be megacore-split (v7x).
            half = (rows + 1) // 2
            tr = ((half + sub - 1) // sub) * sub
        else:
            tr = rows  # full-extent block (valid even when rows % 8 != 0)

    grid = (pl.cdiv(rows, tr),)
    n_elems = rows * C

    return pl.pallas_call(
        _h_swish_kernel,
        out_shape=jax.ShapeDtypeStruct((rows, C), x2d.dtype),
        grid=grid,
        in_specs=[pl.BlockSpec((tr, C), lambda i: (i, 0))],
        out_specs=pl.BlockSpec((tr, C), lambda i: (i, 0)),
        compiler_params=pltpu.CompilerParams(
            dimension_semantics=("parallel",),
            vmem_limit_bytes=32 * 1024 * 1024,
        ),
        cost_estimate=pl.CostEstimate(
            flops=5 * n_elems,
            transcendentals=0,
            bytes_accessed=2 * n_elems * itemsize,
        ),
    )(x2d)


def h_swish(x):
    """Matches the PyTorch h_swish module's forward: x * relu6(x + 3) / 6."""
    # NOTE: `inplace=True` of nn.ReLU6 has no meaning under JAX's functional
    # semantics; numerics are identical.
    orig_shape = x.shape
    n = x.size
    flat = x.reshape(-1)
    sub = _sublane_multiple(x.dtype)

    # Pick the widest lane-dense width C (multiple of 128) dividing the total
    # size, preferring one that also yields >= one native sublane tile of rows.
    c_choice = None
    for cand in (2048, 1024, 512, 256, 128):
        if n % cand == 0:
            if c_choice is None:
                c_choice = cand
            if n // cand >= sub:
                c_choice = cand
                break

    if c_choice is not None:
        y2d = _h_swish_2d(flat.reshape(n // c_choice, c_choice))
        return y2d.reshape(orig_shape)

    # Ragged sizes (not a multiple of 128):
    #   * small tensors -> single full-extent block, no pad/slice round-trip
    #     (masked stores are irrelevant at this size).
    #   * large tensors -> one small 1-D pad, then the lane-dense path.
    if n * jnp.dtype(x.dtype).itemsize <= (1 << 20):
        y = _h_swish_2d(flat.reshape(1, n))
        return y.reshape(orig_shape)

    pad = (-n) % 128
    xp = jnp.pad(flat, (0, pad))
    y = _h_swish_2d(xp.reshape(-1, 128))
    return y.reshape(-1)[:n].reshape(orig_shape)


def _ref_h_swish(x):
    return x * jnp.clip(x + 3.0, 0.0, 6.0) * (1.0 / 6.0)


if __name__ == "__main__":
    key = jax.random.PRNGKey(0)
    k1, k2 = jax.random.split(key)

    # NCHW activation-like input (batch=2, channels=4, spatial=16x16).
    x = jax.random.normal(k1, (2, 4, 16, 16), dtype=jnp.float32) * 3.0
    y = jax.block_until_ready(h_swish(x))
    assert y.shape == x.shape and y.dtype == x.dtype
    assert jnp.max(jnp.abs(y - _ref_h_swish(x))) < 1e-5

    # Odd total size exercises the ragged (full-extent block) path.
    x2 = jax.random.normal(k2, (3, 5, 7), dtype=jnp.float32) * 3.0
    y2 = jax.block_until_ready(h_swish(x2))
    assert y2.shape == x2.shape
    assert jnp.max(jnp.abs(y2 - _ref_h_swish(x2))) < 1e-5

    print("KERNEL_OK")
</pallas_src>

<mosaic_0001>
module attributes {stable_mosaic.version = 11 : i64} {
  func.func @_h_swish_kernel(%arg0: i32, %arg1: memref<8x256xf32, #tpu.memory_space<vmem>>, %arg2: memref<8x256xf32, #tpu.memory_space<vmem>>) attributes {dimension_semantics = [#tpu.dimension_semantics<parallel>], iteration_bounds = array<i64: 1>, scalar_prefetch = 0 : i64, scratch_operands = 0 : i64, tpu.core_type = #tpu.core_type<tc>, window_params = [{transform_indices = @transform_0, window_bounds = array<i64: 8, 256>}, {transform_indices = @transform_1, window_bounds = array<i64: 8, 256>}]} {
    %c0 = arith.constant 0 : index
    %c0_0 = arith.constant 0 : index
    %0 = vector.load %arg1[%c0, %c0_0] : memref<8x256xf32, #tpu.memory_space<vmem>>, vector<8x256xf32>
    %cst = arith.constant 3.000000e+00 : f32
    %1 = vector.broadcast %cst : f32 to vector<8x256xf32>
    %2 = arith.addf %0, %1 : vector<8x256xf32>
    %cst_1 = arith.constant 0.000000e+00 : f32
    %cst_2 = arith.constant 6.000000e+00 : f32
    %3 = vector.broadcast %cst_1 : f32 to vector<8x256xf32>
    %4 = arith.maximumf %3, %2 : vector<8x256xf32>
    %5 = vector.broadcast %cst_2 : f32 to vector<8x256xf32>
    %6 = arith.minimumf %5, %4 : vector<8x256xf32>
    %7 = arith.mulf %0, %6 : vector<8x256xf32>
    %cst_3 = arith.constant 0.166666672 : f32
    %8 = vector.broadcast %cst_3 : f32 to vector<8x256xf32>
    %9 = arith.mulf %7, %8 : vector<8x256xf32>
    %c0_4 = arith.constant 0 : index
    %c0_5 = arith.constant 0 : index
    %10 = vector.load %arg2[%c0_4, %c0_5] : memref<8x256xf32, #tpu.memory_space<vmem>>, vector<8x256xf32>
    tpu.vector_store %arg2[%c0_4, %c0_5], %9 {strides = array<i32>} : memref<8x256xf32, #tpu.memory_space<vmem>>, vector<8x256xf32>,
    return
  }
  func.func @transform_0(%arg0: i32) -> (i32, i32) {
    %c0_i32 = arith.constant 0 : i32
    %c0_i32_0 = arith.constant 0 : i32
    return %arg0, %c0_i32 : i32, i32
  }
  func.func @transform_1(%arg0: i32) -> (i32, i32) {
    %c0_i32 = arith.constant 0 : i32
    %c0_i32_0 = arith.constant 0 : i32
    return %arg0, %c0_i32 : i32, i32
  }
}

</mosaic_0001>

<llo_original>
// kernel: tpu_custom_call.1
$region0: #{tpu_custom_call.1}
  #allocation0 [shape = 'u32[]', space=smem, size = 0x4, offset = 0x4, fixed_abs, tag = 'smem constant byte address 0x4 - core index']
  #allocation1 [shape = 'u32[144,128]{1,0:T(1,128)}', space=vmem, size = 0x12000, scoped, tag = 'internal scratch']
  %s0 = inlined_call_operand.hbm [shape: f32[8,256], index: 0, kind: input, shape index: {}]
  %s1 = inlined_call_operand.hbm [shape: f32[8,256], index: 1, kind: output, shape index: {}]
  %s2 = sld [smem:[#allocation0]]
  $region18: #{tpu_custom_call.1} parent=0
    _
  %s4 = ssub.s32 1, %s2
  %s5 = scalar_select 0, %s4, %s2
  $region1: #{tpu_custom_call.1} parent=0
    #allocation2 [shape = 'u8[8192]{0}', space=vmem, size = 0x2000, scoped, tag = 'input window, operand 0, single buffered']
    #allocation3 [shape = 's32[1]{0}', space=sflag, size = 0x4, scoped, tag = 'scoped memory for tpu_custom_call.1']
    #allocation4 [shape = 's32[1]{0}', space=sflag, size = 0x4, scoped, tag = 'scoped memory for tpu_custom_call.1']
    #allocation5 [shape = 'u8[8192]{0}', space=vmem, size = 0x2000, scoped, tag = 'output window, operand 0, single buffered']
    %6 = vsyncpa [#allocation3], 0
    %7 = vsyncpa [#allocation4], 0
    // Predicated region
    $region2: #{tpu_custom_call.1} parent=1 // pred_check
      _
    $region3: #{tpu_custom_call.1} parent=1 // pred_check_branch
      %9 = sbr.rel (0) target = $region5
    $region4: #{tpu_custom_call.1} parent=1 // pred_region
      %s11 = ssub.s32 256, 256
      %12 = vsyncadd [#allocation3], %s11
      %s14 = sshll.u32 [#allocation2], 4
      %s15 = int_to_ptr.vmem [resolvable:$true] %s14
      %17 = dma.hbm_to_vmem [thread:$0]  %s0, 256, %s15, [#allocation3]
    $region5: #{tpu_custom_call.1} parent=1 // pred_fallthru
      _
    // Predicated region
    $region6: #{tpu_custom_call.1} parent=1 // pred_check
      _
    $region7: #{tpu_custom_call.1} parent=1 // pred_check_branch
      %19 = sbr.rel (0) target = $region9
    $region8: #{tpu_custom_call.1} parent=1 // pred_region
      %20 = dma.done [#allocation3], 256
    $region9: #{tpu_custom_call.1} parent=1 // pred_fallthru
      _
    %v21 = vld [vmem:[#allocation2] sm:$0xff]
    %v22 = vld [vmem:[#allocation2 + $0x8] sm:$0xff]
    %v23 = vadd.f32 %v21, 3.0
    %v24 = vadd.f32 %v22, 3.0
    %v25 = vmax.f32 %v23, 0.0
    %v26 = vmax.f32 %v24, 0.0
    %v27 = vmin.f32 %v25, 6.0
    %v28 = vmin.f32 %v26, 6.0
    %v29 = vmul.f32 %v21, %v27
    %v30 = vmul.f32 %v22, %v28
    %v31 = vmul.f32 %v29, 0.16666667
    %v32 = vmul.f32 %v30, 0.16666667
    %33 = vst [vmem:[#allocation5] sm:$0xff] %v31
    %34 = vst [vmem:[#allocation5 + $0x8] sm:$0xff] %v32
    // Predicated region
    $region10: #{tpu_custom_call.1} parent=1 // pred_check
      _
    $region11: #{tpu_custom_call.1} parent=1 // pred_check_branch
      %36 = sbr.rel (0) target = $region13
    $region12: #{tpu_custom_call.1} parent=1 // pred_region
      %s38 = ssub.s32 256, 256
      %39 = vsyncadd [#allocation4], %s38
      %s41 = sshll.u32 [#allocation5], 4
      %s42 = int_to_ptr.vmem [resolvable:$true] %s41
      %44 = dma.vmem_to_hbm [thread:$0]  %s42, 256, %s1, [#allocation4]
    $region13: #{tpu_custom_call.1} parent=1 // pred_fallthru
      _
    // Predicated region
    $region14: #{tpu_custom_call.1} parent=1 // pred_check
      _
    $region15: #{tpu_custom_call.1} parent=1 // pred_check_branch
      %46 = sbr.rel (0) target = $region17
    $region16: #{tpu_custom_call.1} parent=1 // pred_region
      %47 = dma.done [#allocation4], 256
    $region17: #{tpu_custom_call.1} parent=1 // pred_fallthru
      _
    %48 = vsyncpa [#allocation3], 1
    %49 = vsyncpa [#allocation4], 1

</llo_original>
